<compile_context>
chip_gen: v7x
topology: tpu7x:2x2x1
jax: 0.10.0
libtpu: 0.0.40
codegen_flags: <defaults>
</compile_context>

<pallas_src>
import jax
import jax.numpy as jnp
from jax.experimental import pallas as pl
from jax.experimental.pallas import tpu as pltpu


def _round_up(x, m):
    return ((x + m - 1) // m) * m


def lsr_kernel(inv_sigma_ref, x_ref, w_ref, b_ref, o_ref, acc_ref):
    """One (tm, tn) output tile of relu((x @ W^T) * (1/sigma) + b), tiled over K."""
    k = pl.program_id(2)

    @pl.when(k == 0)
    def _():
        acc_ref[...] = jnp.zeros_like(acc_ref)

    # MXU matmul: (tm, tk) x (tk, tn), f32 accumulation.
    acc_ref[...] += jnp.dot(x_ref[...], w_ref[...],
                            preferred_element_type=jnp.float32)

    @pl.when(k == pl.num_programs(2) - 1)
    def _():
        # Spectral scale applied to the small output tile (exact 1/sigma from SMEM),
        # then bias + ReLU, all in f32 on the accumulator.
        y = acc_ref[...] * inv_sigma_ref[0, 0] + b_ref[...]
        o_ref[...] = jnp.maximum(y, 0.0).astype(o_ref.dtype)


def lsr_forward(x, weight, bias, u, v, *, n_power_iterations=1, eps=1e-12,
                compute_dtype=jnp.float32, out_dtype=jnp.float32,
                tm_max=256, tn_max=512, tk_max=512):
    """Forward pass of LSR: relu(spectral_norm(Linear)(x)).

    x: [B, in_features]; weight: [out_features, in_features]; bias: [out_features];
    u/v: power-iteration vectors of shape [out_features] / [in_features].
    """
    B, in_f = x.shape
    out_f = weight.shape[0]

    w = weight.astype(jnp.float32)

    def _normalize(a):
        return a / jnp.maximum(jnp.linalg.norm(a), eps)

    # Power iteration (same update order as PyTorch's _SpectralNorm._power_method):
    #   u <- normalize(W @ v); v <- normalize(W^T @ u)
    def body(_, uv):
        u_, v_ = uv
        u_ = _normalize(w @ v_)
        v_ = _normalize(w.T @ u_)
        return (u_, v_)

    u, v = jax.lax.fori_loop(0, n_power_iterations, body, (u, v))
    sigma = jnp.dot(u, w @ v)                               # sigma = u^T W v
    inv_sigma = (1.0 / sigma).reshape(1, 1).astype(jnp.float32)  # exact, not approx

    # Pre-transpose W once (outside the hot path): [out_f, in_f] -> [in_f, out_f].
    w_t = w.T

    # Tile sizes: sublane multiple of 8, lane multiple of 128; clamp to a VMEM-safe max.
    tm = min(tm_max, _round_up(B, 8))
    tn = min(tn_max, _round_up(out_f, 128))
    tk = min(tk_max, _round_up(in_f, 128))
    Mp = _round_up(B, tm)
    Np = _round_up(out_f, tn)
    Kp = _round_up(in_f, tk)

    # Zero-padded, lane-dense operands (padding contributes 0 and is sliced off).
    x_p = jnp.zeros((Mp, Kp), compute_dtype).at[:B, :in_f].set(x.astype(compute_dtype))
    w_p = jnp.zeros((Kp, Np), compute_dtype).at[:in_f, :out_f].set(
        w_t.astype(compute_dtype))
    b_p = jnp.zeros((1, Np), jnp.float32).at[0, :out_f].set(bias.astype(jnp.float32))

    grid = (Mp // tm, Np // tn, Kp // tk)

    out_p = pl.pallas_call(
        lsr_kernel,
        out_shape=jax.ShapeDtypeStruct((Mp, Np), out_dtype),
        grid_spec=pltpu.PrefetchScalarGridSpec(
            num_scalar_prefetch=0,
            grid=grid,
            in_specs=[
                # 1/sigma scalar lives in SMEM (whole array, no blocking)
                pl.BlockSpec(memory_space=pltpu.MemorySpace.SMEM),
                pl.BlockSpec((tm, tk), lambda i, j, k: (i, k)),   # x tile
                pl.BlockSpec((tk, tn), lambda i, j, k: (k, j)),   # W^T tile
                pl.BlockSpec((1, tn), lambda i, j, k: (0, j)),    # bias tile
            ],
            out_specs=pl.BlockSpec((tm, tn), lambda i, j, k: (i, j)),
            scratch_shapes=[pltpu.VMEM((tm, tn), jnp.float32)],
        ),
        compiler_params=pltpu.CompilerParams(
            dimension_semantics=("parallel", "parallel", "arbitrary")),
    )(inv_sigma, x_p, w_p, b_p)

    return out_p[:B, :out_f]


def lsr_reference(x, weight, bias, u, v, *, n_power_iterations=1, eps=1e-12):
    """Pure-JAX reference for correctness checking."""
    w = weight.astype(jnp.float32)

    def _normalize(a):
        return a / jnp.maximum(jnp.linalg.norm(a), eps)

    for _ in range(n_power_iterations):
        u = _normalize(w @ v)
        v = _normalize(w.T @ u)
    sigma = jnp.dot(u, w @ v)
    y = x @ (w / sigma).T + bias
    return jnp.maximum(y, 0.0)


if __name__ == "__main__":
    B, in_features, out_features = 8, 32, 32

    key = jax.random.PRNGKey(0)
    kx, kw, kb, ku, kv = jax.random.split(key, 5)

    x = jax.random.normal(kx, (B, in_features), dtype=jnp.float32)

    # Deterministic synthetic parameters (nn.Linear shapes: W [out,in], b [out]).
    bound = 1.0 / (in_features ** 0.5)
    weight = jax.random.uniform(kw, (out_features, in_features),
                                minval=-bound, maxval=bound, dtype=jnp.float32)
    bias = jax.random.uniform(kb, (out_features,),
                              minval=-bound, maxval=bound, dtype=jnp.float32)

    # Power-iteration vectors (PyTorch initializes with normal + normalize,
    # then runs 15 init iterations; we fold those into the iteration count).
    def _normalize(a, eps=1e-12):
        return a / jnp.maximum(jnp.linalg.norm(a), eps)

    u0 = _normalize(jax.random.normal(ku, (out_features,), dtype=jnp.float32))
    v0 = _normalize(jax.random.normal(kv, (in_features,), dtype=jnp.float32))
    n_iters = 16  # 15 at construction time + 1 per forward (PyTorch defaults)

    # f32 path (exact): matches reference to tight tolerance.
    out = lsr_forward(x, weight, bias, u0, v0, n_power_iterations=n_iters)
    out = jax.block_until_ready(out)

    ref = lsr_reference(x, weight, bias, u0, v0, n_power_iterations=n_iters)
    assert out.shape == (B, out_features)
    assert jnp.allclose(out, ref, atol=1e-5, rtol=1e-5), "f32 mismatch vs reference"

    # bf16 MXU-input path (f32 accumulation / scale / bias / relu): loose tolerance.
    out_bf16 = lsr_forward(x, weight, bias, u0, v0, n_power_iterations=n_iters,
                           compute_dtype=jnp.bfloat16)
    out_bf16 = jax.block_until_ready(out_bf16)
    assert out_bf16.shape == (B, out_features)
    assert jnp.allclose(out_bf16, ref, atol=5e-2, rtol=5e-2), "bf16 mismatch vs reference"

    print("KERNEL_OK")
</pallas_src>

<mosaic_0001>
module attributes {stable_mosaic.version = 11 : i64} {
  func.func @lsr_kernel(%arg0: i32, %arg1: i32, %arg2: i32, %arg3: memref<1x1xf32, #tpu.memory_space<smem>>, %arg4: memref<8x128xf32, #tpu.memory_space<vmem>>, %arg5: memref<128x128xf32, #tpu.memory_space<vmem>>, %arg6: memref<1x128xf32, #tpu.memory_space<vmem>>, %arg7: memref<8x128xf32, #tpu.memory_space<vmem>>, %arg8: memref<8x128xf32, #tpu.memory_space<vmem>>) attributes {dimension_semantics = [#tpu.dimension_semantics<parallel>, #tpu.dimension_semantics<parallel>, #tpu.dimension_semantics<arbitrary>], iteration_bounds = array<i64: 1, 1, 1>, scalar_prefetch = 0 : i64, scratch_operands = 1 : i64, tpu.core_type = #tpu.core_type<tc>, window_params = [{transform_indices = @transform_0, window_bounds = array<i64: 1, 1>}, {transform_indices = @transform_1, window_bounds = array<i64: 8, 128>}, {transform_indices = @transform_2, window_bounds = array<i64: 128, 128>}, {transform_indices = @transform_3, window_bounds = array<i64: 1, 128>}, {transform_indices = @transform_4, window_bounds = array<i64: 8, 128>}]} {
    %c0_i32 = arith.constant 0 : i32
    %0 = arith.cmpi eq, %arg2, %c0_i32 : i32
    %1 = arith.extui %0 : i1 to i32
    %c0_i32_0 = arith.constant 0 : i32
    %2 = arith.cmpi ne, %1, %c0_i32_0 : i32
    scf.if %2 {
      %cst_10 = arith.constant 0.000000e+00 : f32
      %12 = vector.broadcast %cst_10 : f32 to vector<8x128xf32>
      %c0_11 = arith.constant 0 : index
      %c0_12 = arith.constant 0 : index
      %13 = vector.load %arg8[%c0_11, %c0_12] : memref<8x128xf32, #tpu.memory_space<vmem>>, vector<8x128xf32>
      tpu.vector_store %arg8[%c0_11, %c0_12], %12 {strides = array<i32>} : memref<8x128xf32, #tpu.memory_space<vmem>>, vector<8x128xf32>,
    } else {
    }
    %c0 = arith.constant 0 : index
    %c0_1 = arith.constant 0 : index
    %3 = vector.load %arg8[%c0, %c0_1] : memref<8x128xf32, #tpu.memory_space<vmem>>, vector<8x128xf32>
    %c0_2 = arith.constant 0 : index
    %c0_3 = arith.constant 0 : index
    %4 = vector.load %arg4[%c0_2, %c0_3] : memref<8x128xf32, #tpu.memory_space<vmem>>, vector<8x128xf32>
    %c0_4 = arith.constant 0 : index
    %c0_5 = arith.constant 0 : index
    %5 = vector.load %arg5[%c0_4, %c0_5] : memref<128x128xf32, #tpu.memory_space<vmem>>, vector<128x128xf32>
    %cst = arith.constant dense<0.000000e+00> : vector<8x128xf32>
    %6 = tpu.matmul %4, %5, %cst {dimension_numbers = #tpu.dot_dimension_numbers<[1], [0], [0], [1], [0, 0, 1, 1], [], []>} : vector<8x128xf32>, vector<128x128xf32>, vector<8x128xf32> -> vector<8x128xf32>
    %7 = arith.addf %3, %6 : vector<8x128xf32>
    %c0_6 = arith.constant 0 : index
    %c0_7 = arith.constant 0 : index
    %8 = vector.load %arg8[%c0_6, %c0_7] : memref<8x128xf32, #tpu.memory_space<vmem>>, vector<8x128xf32>
    tpu.vector_store %arg8[%c0_6, %c0_7], %7 {strides = array<i32>} : memref<8x128xf32, #tpu.memory_space<vmem>>, vector<8x128xf32>,
    %c0_i32_8 = arith.constant 0 : i32
    %9 = arith.cmpi eq, %arg2, %c0_i32_8 : i32
    %10 = arith.extui %9 : i1 to i32
    %c0_i32_9 = arith.constant 0 : i32
    %11 = arith.cmpi ne, %10, %c0_i32_9 : i32
    scf.if %11 {
      %c0_10 = arith.constant 0 : index
      %c0_11 = arith.constant 0 : index
      %12 = vector.load %arg8[%c0_10, %c0_11] : memref<8x128xf32, #tpu.memory_space<vmem>>, vector<8x128xf32>
      %c0_12 = arith.constant 0 : index
      %c0_13 = arith.constant 0 : index
      %13 = memref.load %arg3[%c0_12, %c0_13] : memref<1x1xf32, #tpu.memory_space<smem>>
      %14 = vector.broadcast %13 : f32 to vector<8x128xf32>
      %15 = arith.mulf %12, %14 : vector<8x128xf32>
      %c0_14 = arith.constant 0 : index
      %c0_15 = arith.constant 0 : index
      %16 = vector.load %arg6[%c0_14, %c0_15] : memref<1x128xf32, #tpu.memory_space<vmem>>, vector<1x128xf32>
      %17 = vector.broadcast %16 : vector<1x128xf32> to vector<8x128xf32>
      %18 = arith.addf %15, %17 : vector<8x128xf32>
      %cst_16 = arith.constant 0.000000e+00 : f32
      %19 = vector.broadcast %cst_16 : f32 to vector<8x128xf32>
      %20 = arith.maximumf %18, %19 : vector<8x128xf32>
      %c0_17 = arith.constant 0 : index
      %c0_18 = arith.constant 0 : index
      %21 = vector.load %arg7[%c0_17, %c0_18] : memref<8x128xf32, #tpu.memory_space<vmem>>, vector<8x128xf32>
      tpu.vector_store %arg7[%c0_17, %c0_18], %20 {strides = array<i32>} : memref<8x128xf32, #tpu.memory_space<vmem>>, vector<8x128xf32>,
    } else {
    }
    return
  }
  func.func @transform_0(%arg0: i32, %arg1: i32, %arg2: i32) -> (i32, i32) {
    %c0_i32 = arith.constant 0 : i32
    %c0_i32_0 = arith.constant 0 : i32
    %c0_i32_1 = arith.constant 0 : i32
    return %c0_i32, %c0_i32_0 : i32, i32
  }
  func.func @transform_1(%arg0: i32, %arg1: i32, %arg2: i32) -> (i32, i32) {
    %c0_i32 = arith.constant 0 : i32
    return %arg0, %arg2 : i32, i32
  }
  func.func @transform_2(%arg0: i32, %arg1: i32, %arg2: i32) -> (i32, i32) {
    %c0_i32 = arith.constant 0 : i32
    return %arg2, %arg1 : i32, i32
  }
  func.func @transform_3(%arg0: i32, %arg1: i32, %arg2: i32) -> (i32, i32) {
    %c0_i32 = arith.constant 0 : i32
    %c0_i32_0 = arith.constant 0 : i32
    return %c0_i32, %arg1 : i32, i32
  }
  func.func @transform_4(%arg0: i32, %arg1: i32, %arg2: i32) -> (i32, i32) {
    %c0_i32 = arith.constant 0 : i32
    return %arg0, %arg1 : i32, i32
  }
}

</mosaic_0001>

<llo_original>
// kernel: tpu_custom_call.1
$region0: #{tpu_custom_call.1}
  #allocation0 [shape = 'u32[]', space=smem, size = 0x4, offset = 0x4, fixed_abs, tag = 'smem constant byte address 0x4 - core index']
  #allocation1 [shape = 'u32[144,128]{1,0:T(1,128)}', space=vmem, size = 0x12000, scoped, tag = 'internal scratch']
  #allocation2 [shape = 'f32[8,128]{1,0:T(8,128)}', space=vmem, size = 0x1000, scoped, tag = 'scratch operand']
  #allocation3 [shape = 'f32[1,1]{1,0:T(1,128)S(6)}', space=smem, size = 0x200, scoped, tag = 'scoped memory for tpu_custom_call.1']
  %s0 = inlined_call_operand.<no memory space> [shape: f32[1,1], index: 0, kind: input, shape index: {}]
  %s1 = inlined_call_operand.hbm [shape: f32[8,128], index: 1, kind: input, shape index: {}]
  %s2 = inlined_call_operand.hbm [shape: f32[128,128], index: 2, kind: input, shape index: {}]
  %s3 = inlined_call_operand.vmem [shape: f32[1,128], index: 3, kind: input, shape index: {}]
  %s4 = inlined_call_operand.hbm [shape: f32[8,128], index: 4, kind: output, shape index: {}]
  %s5 = sld [smem:[#allocation0]]
  $region42: #{tpu_custom_call.1} parent=0
    _
  %s7 = ssub.s32 1, %s5
  %s8 = scalar_select 0, %s7, %s5
  %9 = sst [smem:[#allocation3]] %s0
  $region1: #{tpu_custom_call.1} parent=0
    #allocation4 [shape = 'u8[4096]{0}', space=vmem, size = 0x1000, scoped, tag = 'input window, operand 1, single buffered']
    #allocation5 [shape = 's32[1]{0}', space=sflag, size = 0x4, scoped, tag = 'scoped memory for tpu_custom_call.1']
    #allocation6 [shape = 's32[1]{0}', space=sflag, size = 0x4, scoped, tag = 'scoped memory for tpu_custom_call.1']
    #allocation7 [shape = 'u8[65536]{0}', space=vmem, size = 0x10000, scoped, tag = 'input window, operand 2, single buffered']
    #allocation8 [shape = 's32[1]{0}', space=sflag, size = 0x4, scoped, tag = 'scoped memory for tpu_custom_call.1']
    #allocation9 [shape = 'u8[4096]{0}', space=vmem, size = 0x1000, scoped, tag = 'output window, operand 0, single buffered']
    %10 = vsyncpa [#allocation5], 0
    %11 = vsyncpa [#allocation8], 0
    %12 = vsyncpa [#allocation6], 0
    // Predicated region
    $region2: #{tpu_custom_call.1} parent=1 // pred_check
      _
    $region3: #{tpu_custom_call.1} parent=1 // pred_check_branch
      %14 = sbr.rel (0) target = $region5
    $region4: #{tpu_custom_call.1} parent=1 // pred_region
      _
    $region5: #{tpu_custom_call.1} parent=1 // pred_fallthru
      _
    // Predicated region
    $region6: #{tpu_custom_call.1} parent=1 // pred_check
      _
    $region7: #{tpu_custom_call.1} parent=1 // pred_check_branch
      %16 = sbr.rel (0) target = $region9
    $region8: #{tpu_custom_call.1} parent=1 // pred_region
      %s18 = ssub.s32 128, 128
      %19 = vsyncadd [#allocation5], %s18
      %s21 = sshll.u32 [#allocation4], 4
      %s22 = int_to_ptr.vmem [resolvable:$true] %s21
      %24 = dma.hbm_to_vmem [thread:$0]  %s1, 128, %s22, [#allocation5]
    $region9: #{tpu_custom_call.1} parent=1 // pred_fallthru
      _
    // Predicated region
    $region10: #{tpu_custom_call.1} parent=1 // pred_check
      _
    $region11: #{tpu_custom_call.1} parent=1 // pred_check_branch
      %26 = sbr.rel (0) target = $region13
    $region12: #{tpu_custom_call.1} parent=1 // pred_region
      %s28 = ssub.s32 2048, 2048
      %29 = vsyncadd [#allocation8], %s28
      %s30 = sshll.u32 [#allocation7], 4
      %s31 = int_to_ptr.vmem [resolvable:$true] %s30
      %36 = dma.hbm_to_vmem [thread:$0]  %s2, 2048, %s31, [#allocation8], 128, 128, 8
    $region13: #{tpu_custom_call.1} parent=1 // pred_fallthru
      _
    // Predicated region
    $region14: #{tpu_custom_call.1} parent=1 // pred_check
      _
    $region15: #{tpu_custom_call.1} parent=1 // pred_check_branch
      %38 = sbr.rel (0) target = $region17
    $region16: #{tpu_custom_call.1} parent=1 // pred_region
      _
    $region17: #{tpu_custom_call.1} parent=1 // pred_fallthru
      _
    // Predicated region
    $region18: #{tpu_custom_call.1} parent=1 // pred_check
      _
    $region19: #{tpu_custom_call.1} parent=1 // pred_check_branch
      %40 = sbr.rel (0) target = $region21
    $region20: #{tpu_custom_call.1} parent=1 // pred_region
      %41 = dma.done [#allocation5], 128
    $region21: #{tpu_custom_call.1} parent=1 // pred_fallthru
      _
    // Predicated region
    $region22: #{tpu_custom_call.1} parent=1 // pred_check
      _
    $region23: #{tpu_custom_call.1} parent=1 // pred_check_branch
      %43 = sbr.rel (0) target = $region25
    $region24: #{tpu_custom_call.1} parent=1 // pred_region
      %44 = dma.done [#allocation8], 2048
    $region25: #{tpu_custom_call.1} parent=1 // pred_fallthru
      _
    %p45 = scmp.eq.s32.totalorder 0, 0
    // Predicated region
    $region26: #{tpu_custom_call.1} parent=1 // pred_check
      %p46 = pneg %p45
    $region27: #{tpu_custom_call.1} parent=1 // pred_check_branch
      %48 = sbr.rel (%p46) target = $region29
    $region28: #{tpu_custom_call.1} parent=1 // pred_region
      %49 = vst [vmem:[#allocation2] sm:$0xff] 0.0
    $region29: #{tpu_custom_call.1} parent=1 // pred_fallthru
      _
    %v50 = vld [vmem:[#allocation2] sm:$0xff]
    %v51 = vld [vmem:[#allocation4] sm:$0xff]
    %v52 = vld [vmem:[#allocation7] sm:$0xff]
    %v53 = vld [vmem:[#allocation7 + $0x8] sm:$0xff]
    %v54 = vld [vmem:[#allocation7 + $0x10] sm:$0xff]
    %v55 = vld [vmem:[#allocation7 + $0x18] sm:$0xff]
    %v56 = vld [vmem:[#allocation7 + $0x20] sm:$0xff]
    %v57 = vld [vmem:[#allocation7 + $0x28] sm:$0xff]
    %v58 = vld [vmem:[#allocation7 + $0x30] sm:$0xff]
    %v59 = vld [vmem:[#allocation7 + $0x38] sm:$0xff]
    %v60 = vld [vmem:[#allocation7 + $0x40] sm:$0xff]
    %v61 = vld [vmem:[#allocation7 + $0x48] sm:$0xff]
    %v62 = vld [vmem:[#allocation7 + $0x50] sm:$0xff]
    %v63 = vld [vmem:[#allocation7 + $0x58] sm:$0xff]
    %v64 = vld [vmem:[#allocation7 + $0x60] sm:$0xff]
    %v65 = vld [vmem:[#allocation7 + $0x68] sm:$0xff]
    %v66 = vld [vmem:[#allocation7 + $0x70] sm:$0xff]
    %v67 = vld [vmem:[#allocation7 + $0x78] sm:$0xff]
    %68 = vmatprep.subr.mxu0 0.0
    %69 = vmatpush1.msra.mxu0 %v52
    %70 = vmatprep.subr.mxu0 0.0
    %71 = vmatpush1.msra.mxu0 %v53
    %72 = vmatprep.subr.mxu0 0.0
    %73 = vmatpush1.msra.mxu0 %v54
    %74 = vmatprep.subr.mxu0 0.0
    %75 = vmatpush1.msra.mxu0 %v55
    %76 = vmatprep.subr.mxu0 0.0
    %77 = vmatpush1.msra.mxu0 %v56
    %78 = vmatprep.subr.mxu0 0.0
    %79 = vmatpush1.msra.mxu0 %v57
    %80 = vmatprep.subr.mxu0 0.0
    %81 = vmatpush1.msra.mxu0 %v58
    %82 = vmatprep.subr.mxu0 0.0
    %83 = vmatpush1.msra.mxu0 %v59
    %84 = vmatprep.subr.mxu0 0.0
    %85 = vmatpush1.msra.mxu0 %v60
    %86 = vmatprep.subr.mxu0 0.0
    %87 = vmatpush1.msra.mxu0 %v61
    %88 = vmatprep.subr.mxu0 0.0
    %89 = vmatpush1.msra.mxu0 %v62
    %90 = vmatprep.subr.mxu0 0.0
    %91 = vmatpush1.msra.mxu0 %v63
    %92 = vmatprep.subr.mxu0 0.0
    %93 = vmatpush1.msra.mxu0 %v64
    %94 = vmatprep.subr.mxu0 0.0
    %95 = vmatpush1.msra.mxu0 %v65
    %96 = vmatprep.subr.mxu0 0.0
    %97 = vmatpush1.msra.mxu0 %v66
    %98 = vmatprep.subr.mxu0 0.0
    %99 = vmatpush1.msra.mxu0 %v67
    %100 = vmatprep.subr.mxu0 0.0
    %101 = vmatpush1.msra.mxu0 0.0
    %102 = vmatprep.subr.mxu0 0.0
    %103 = vmatpush1.msra.mxu0 0.0
    %104 = vmatprep.subr.mxu0 0.0
    %105 = vmatpush1.msra.mxu0 0.0
    %106 = vmatprep.subr.mxu0 0.0
    %107 = vmatpush1.msra.mxu0 0.0
    %108 = vmatprep.subr.mxu0 0.0
    %109 = vmatpush1.msra.mxu0 0.0
    %110 = vmatprep.subr.mxu0 0.0
    %111 = vmatpush1.msra.mxu0 0.0
    %112 = vmatprep.subr.mxu0 0.0
    %113 = vmatpush1.msra.mxu0 0.0
    %114 = vmatprep.subr.mxu0 0.0
    %115 = vmatpush1.msra.mxu0 0.0
    %116 = vmatprep.subr.mxu0 0.0
    %117 = vmatpush1.msra.mxu0 0.0
    %118 = vmatprep.subr.mxu0 0.0
    %119 = vmatpush1.msra.mxu0 0.0
    %120 = vmatprep.subr.mxu0 0.0
    %121 = vmatpush1.msra.mxu0 0.0
    %122 = vmatprep.subr.mxu0 0.0
    %123 = vmatpush1.msra.mxu0 0.0
    %124 = vmatprep.subr.mxu0 0.0
    %125 = vmatpush1.msra.mxu0 0.0
    %126 = vmatprep.subr.mxu0 0.0
    %127 = vmatpush1.msra.mxu0 0.0
    %128 = vmatprep.subr.mxu0 0.0
    %129 = vmatpush1.msra.mxu0 0.0
    %130 = vmatprep.subr.mxu0 0.0
    %131 = vmatpush1.msra.mxu0 0.0
    %132 = vmatprep.mubr.f32.mxu0 0.0
    %133 = vmatmul.mubr.f32.gmra.mrb[0].mxu0 %v51
    %v134 = vpop.f32.mrb[0].mxu0
    %v135 = vadd.f32 0.0, %v134
    %v136 = vpop.f32.mrb[0].mxu0
    %137 = vdwg.mxu0
    %v138 = vadd.f32 %v50, %v135
    %139 = vst [vmem:[#allocation2] sm:$0xff] %v138
    // Predicated region
    $region30: #{tpu_custom_call.1} parent=1 // pred_check
      %p140 = pneg %p45
    $region31: #{tpu_custom_call.1} parent=1 // pred_check_branch
      %142 = sbr.rel (%p140) target = $region33
    $region32: #{tpu_custom_call.1} parent=1 // pred_region
      %v143 = vld [vmem:[#allocation2] sm:$0xff]
      %s144 = sld [smem:[#allocation3]]
      %v145 = vstv %s144
      %v146 = vmul.f32 %v143, %v145
      %v147 = vld [vmem:[%s3] sm:$0x1]
      %v149 = vlaneseq
      %v150 = vshrl.u32 %v149, 7
      %v151 = vsub.s32 0, %v150
      %v152 = vrot.slane %v147, %v151
      %v154 = vadd.f32 %v146, %v152
      %v155 = vmax.f32 %v154, 0.0
      %156 = vst [vmem:[#allocation9] sm:$0xff] %v155
    $region33: #{tpu_custom_call.1} parent=1 // pred_fallthru
      _
    // Predicated region
    $region34: #{tpu_custom_call.1} parent=1 // pred_check
      _
    $region35: #{tpu_custom_call.1} parent=1 // pred_check_branch
      %158 = sbr.rel (0) target = $region37
    $region36: #{tpu_custom_call.1} parent=1 // pred_region
      %s160 = ssub.s32 128, 128
      %161 = vsyncadd [#allocation6], %s160
      %s163 = sshll.u32 [#allocation9], 4
      %s164 = int_to_ptr.vmem [resolvable:$true] %s163
      %166 = dma.vmem_to_hbm [thread:$0]  %s164, 128, %s4, [#allocation6]
    $region37: #{tpu_custom_call.1} parent=1 // pred_fallthru
      _
    // Predicated region
    $region38: #{tpu_custom_call.1} parent=1 // pred_check
      _
    $region39: #{tpu_custom_call.1} parent=1 // pred_check_branch
      %168 = sbr.rel (0) target = $region41
    $region40: #{tpu_custom_call.1} parent=1 // pred_region
      %169 = dma.done [#allocation6], 128
    $region41: #{tpu_custom_call.1} parent=1 // pred_fallthru
      _
    %170 = vsyncpa [#allocation5], 1
    %171 = vsyncpa [#allocation8], 1
    %172 = vsyncpa [#allocation6], 1

</llo_original>
